<compile_context>
chip_gen: v6e
topology: v6e:2x2x1
jax: 0.10.0
libtpu: 0.0.40
codegen_flags: <defaults>
</compile_context>

<pallas_src>
import jax
import jax.numpy as jnp
from jax.experimental import pallas as pl
from jax.experimental.pallas import tpu as pltpu


C_IN = 320
C_OUT = 3

# Max lanes the sigmoid epilogue materializes at once (16 f32 vregs).
_EPILOGUE_CHUNK = 2048


def _rgbnet_kernel(x_ref, w_ref, b_ref, o_ref):
    # x_ref: (C_IN, tile_hw) f32   one batch element's channel slab
    # w_ref: (C_OUT, C_IN)  f32    resident across the whole grid
    # b_ref: (C_OUT, 1)     f32
    # o_ref: (C_OUT, tile_hw)      lane-dense output block (NCHW order)
    tile_hw = x_ref.shape[1]
    w = w_ref[...]          # hoisted: read once per grid step
    b = b_ref[...]

    chunk = tile_hw if tile_hw <= 4096 else _EPILOGUE_CHUNK
    # Static Python loop over lane chunks keeps vreg pressure low at large
    # tiles (each chunk's f32 (3, chunk) accumulator is <= 16 vregs) while the
    # whole tile's input DMA is still one big, fully amortized transfer.
    for start in range(0, tile_hw, chunk):
        sz = min(chunk, tile_hw - start)
        xs = x_ref[:, pl.ds(start, sz)]
        acc = jnp.dot(w, xs, preferred_element_type=jnp.float32) + b
        # Exact sigmoid in f32: exp goes to the EUP; the tiny (3, sz) divide
        # is irrelevant on this mem-bound kernel.
        o_ref[:, pl.ds(start, sz)] = (1.0 / (1.0 + jnp.exp(-acc))).astype(
            o_ref.dtype
        )


def _pick_tile_hw(hw, max_tile):
    """Choose the lane-tile size for the HW axis."""
    if hw <= max_tile:
        # Single full-extent block per batch element (legal for any hw).
        return hw
    # Prefer an exact multiple-of-128 divisor: every store is unmasked.
    for t in (8192, 6144, 4096, 3072, 2048, 1536, 1024, 768, 512, 384, 256, 128):
        if t <= max_tile and hw % t == 0:
            return t
    # Otherwise take the largest multiple of 128 and let Pallas mask the
    # partial last block (no pad copy, no output slice needed).
    return max(128, (max_tile // 128) * 128)


def rgbnet_forward(x_nchw, weight, bias, *, max_tile_hw=8192):
    """x_nchw: (N, 320, H, W); weight: (3, 320, 1, 1); bias: (3,)."""
    N, C, H, W = x_nchw.shape
    assert C == C_IN
    HW = H * W

    # Free, layout-preserving reshape: NCHW is contiguous as (N, C, H*W).
    x3 = x_nchw.reshape(N, C_IN, HW)
    w2d = weight.reshape(C_OUT, C_IN).astype(jnp.float32)   # (3, 320)
    b2d = bias.reshape(C_OUT, 1).astype(jnp.float32)         # (3, 1)

    tile_hw = _pick_tile_hw(HW, max_tile_hw)
    grid = (N, pl.cdiv(HW, tile_hw))   # partial last block handled by Pallas

    # Enough for the 2x double-buffered (C_IN+C_OUT, tile_hw) blocks plus
    # compiler scratch; safe on every generation (v7x has 64 MiB/TC physical,
    # v5e/v6e have 128 MiB).
    vmem_limit_bytes = 40 << 20

    itemsize = jnp.dtype(x_nchw.dtype).itemsize
    cost = pl.CostEstimate(
        flops=2 * C_OUT * C_IN * N * HW,
        transcendentals=C_OUT * N * HW,
        bytes_accessed=itemsize * (N * HW * (C_IN + C_OUT) + C_OUT * (C_IN + 1)),
    )

    out3 = pl.pallas_call(
        _rgbnet_kernel,
        out_shape=jax.ShapeDtypeStruct((N, C_OUT, HW), x_nchw.dtype),
        grid_spec=pltpu.PrefetchScalarGridSpec(
            num_scalar_prefetch=0,
            grid=grid,
            in_specs=[
                # Batch dim squeezed out; kernel sees (C_IN, tile_hw).
                pl.BlockSpec((None, C_IN, tile_hw), lambda n, j: (n, 0, j)),
                pl.BlockSpec((C_OUT, C_IN), lambda n, j: (0, 0)),
                pl.BlockSpec((C_OUT, 1), lambda n, j: (0, 0)),
            ],
            out_specs=pl.BlockSpec((None, C_OUT, tile_hw), lambda n, j: (n, 0, j)),
        ),
        compiler_params=pltpu.CompilerParams(
            dimension_semantics=("parallel", "parallel"),
            vmem_limit_bytes=vmem_limit_bytes,
        ),
        cost_estimate=cost,
    )(x3, w2d, b2d)

    # (N, 3, H*W) -> (N, 3, H, W): free reshape, already NCHW.
    return out3.reshape(N, C_OUT, H, W)


if __name__ == "__main__":
    key = jax.random.PRNGKey(0)
    k_x, k_w, k_b = jax.random.split(key, 3)

    # Small but module-consistent shapes: batch=2, C=320 (fixed), spatial=16.
    N, H, W = 2, 16, 16
    x = jax.random.normal(k_x, (N, C_IN, H, W), dtype=jnp.float32)

    # Deterministic synthetic params matching Conv2d(320, 3, 1) shapes.
    fan_in = C_IN  # 320 * 1 * 1
    bound = 1.0 / (fan_in ** 0.5)
    weight = jax.random.uniform(
        k_w, (C_OUT, C_IN, 1, 1), minval=-bound, maxval=bound, dtype=jnp.float32
    )
    bias = jax.random.uniform(
        k_b, (C_OUT,), minval=-bound, maxval=bound, dtype=jnp.float32
    )

    out = rgbnet_forward(x, weight, bias)
    out = jax.block_until_ready(out)

    # Reference check in plain JAX (1x1 conv == channel matmul).
    ref = jax.nn.sigmoid(
        jnp.einsum("nchw,oc->nohw", x, weight.reshape(C_OUT, C_IN))
        + bias[None, :, None, None]
    )
    assert out.shape == (N, C_OUT, H, W)
    assert jnp.allclose(out, ref, atol=1e-5, rtol=1e-5)

    print("KERNEL_OK")
</pallas_src>

<mosaic_0001>
module attributes {stable_mosaic.version = 11 : i64} {
  func.func @_rgbnet_kernel(%arg0: i32, %arg1: i32, %arg2: memref<1x320x256xf32, #tpu.memory_space<vmem>>, %arg3: memref<3x320xf32, #tpu.memory_space<vmem>>, %arg4: memref<3x1xf32, #tpu.memory_space<vmem>>, %arg5: memref<1x3x256xf32, #tpu.memory_space<vmem>>) attributes {dimension_semantics = [#tpu.dimension_semantics<parallel>, #tpu.dimension_semantics<parallel>], iteration_bounds = array<i64: 2, 1>, scalar_prefetch = 0 : i64, scratch_operands = 0 : i64, tpu.core_type = #tpu.core_type<tc>, window_params = [{transform_indices = @transform_0, window_bounds = array<i64: 1, 320, 256>}, {pipeline_mode = #tpu.pipeline_mode<synchronous>, transform_indices = @transform_1, window_bounds = array<i64: 3, 320>}, {pipeline_mode = #tpu.pipeline_mode<synchronous>, transform_indices = @transform_2, window_bounds = array<i64: 3, 1>}, {transform_indices = @transform_3, window_bounds = array<i64: 1, 3, 256>}]} {
    %c0 = arith.constant 0 : index
    %c0_0 = arith.constant 0 : index
    %0 = vector.load %arg3[%c0, %c0_0] : memref<3x320xf32, #tpu.memory_space<vmem>>, vector<3x320xf32>
    %c0_1 = arith.constant 0 : index
    %c0_2 = arith.constant 0 : index
    %1 = vector.load %arg4[%c0_1, %c0_2] : memref<3x1xf32, #tpu.memory_space<vmem>>, vector<3x1xf32>
    %c0_3 = arith.constant 0 : index
    %c0_4 = arith.constant 0 : index
    %c0_5 = arith.constant 0 : index
    %2 = vector.load %arg2[%c0_3, %c0_4, %c0_5] : memref<1x320x256xf32, #tpu.memory_space<vmem>>, vector<1x320x256xf32>
    %3 = vector.shape_cast %2 : vector<1x320x256xf32> to vector<320x256xf32>
    %cst = arith.constant dense<0.000000e+00> : vector<3x256xf32>
    %4 = tpu.matmul %0, %3, %cst {dimension_numbers = #tpu.dot_dimension_numbers<[1], [0], [0], [1], [0, 0, 1, 1], [], []>} : vector<3x320xf32>, vector<320x256xf32>, vector<3x256xf32> -> vector<3x256xf32>
    %5 = vector.broadcast %1 : vector<3x1xf32> to vector<3x256xf32>
    %6 = arith.addf %4, %5 : vector<3x256xf32>
    %cst_6 = arith.constant 0.000000e+00 : f32
    %7 = vector.broadcast %cst_6 : f32 to vector<3x256xf32>
    %8 = arith.subf %7, %6 : vector<3x256xf32>
    %9 = math.exp %8 : vector<3x256xf32>
    %cst_7 = arith.constant 1.000000e+00 : f32
    %10 = vector.broadcast %cst_7 : f32 to vector<3x256xf32>
    %11 = arith.addf %10, %9 : vector<3x256xf32>
    %cst_8 = arith.constant 1.000000e+00 : f32
    %12 = vector.broadcast %cst_8 : f32 to vector<3x256xf32>
    %13 = arith.divf %12, %11 : vector<3x256xf32>
    %c0_9 = arith.constant 0 : index
    %c0_10 = arith.constant 0 : index
    %c0_11 = arith.constant 0 : index
    %14 = vector.load %arg5[%c0_9, %c0_10, %c0_11] : memref<1x3x256xf32, #tpu.memory_space<vmem>>, vector<1x3x256xf32>
    %15 = vector.shape_cast %14 : vector<1x3x256xf32> to vector<3x256xf32>
    %16 = vector.shape_cast %13 : vector<3x256xf32> to vector<1x3x256xf32>
    tpu.vector_store %arg5[%c0_9, %c0_10, %c0_11], %16 {strides = array<i32>} : memref<1x3x256xf32, #tpu.memory_space<vmem>>, vector<1x3x256xf32>,
    return
  }
  func.func @transform_0(%arg0: i32, %arg1: i32) -> (i32, i32, i32) {
    %c0_i32 = arith.constant 0 : i32
    %c0_i32_0 = arith.constant 0 : i32
    return %arg0, %c0_i32, %arg1 : i32, i32, i32
  }
  func.func @transform_1(%arg0: i32, %arg1: i32) -> (i32, i32) {
    %c0_i32 = arith.constant 0 : i32
    %c0_i32_0 = arith.constant 0 : i32
    %c0_i32_1 = arith.constant 0 : i32
    return %c0_i32, %c0_i32_0 : i32, i32
  }
  func.func @transform_2(%arg0: i32, %arg1: i32) -> (i32, i32) {
    %c0_i32 = arith.constant 0 : i32
    %c0_i32_0 = arith.constant 0 : i32
    %c0_i32_1 = arith.constant 0 : i32
    return %c0_i32, %c0_i32_0 : i32, i32
  }
  func.func @transform_3(%arg0: i32, %arg1: i32) -> (i32, i32, i32) {
    %c0_i32 = arith.constant 0 : i32
    %c0_i32_0 = arith.constant 0 : i32
    return %arg0, %c0_i32, %arg1 : i32, i32, i32
  }
}

</mosaic_0001>

<llo_original>
// kernel: tpu_custom_call.1
$region0: #{tpu_custom_call.1}
  #allocation0 [shape = 'u32[]', space=smem, size = 0x4, offset = 0x4, fixed_abs, tag = 'smem constant byte address 0x4 - core index']
  #allocation1 [shape = 'u32[144,128]{1,0:T(1,128)}', space=vmem, size = 0x12000, scoped, tag = 'internal scratch']
  %s0 = inlined_call_operand.hbm [shape: f32[2,320,256], index: 0, kind: input, shape index: {}]
  %s1 = inlined_call_operand.hbm [shape: f32[3,320], index: 1, kind: input, shape index: {}]
  %s2 = inlined_call_operand.vmem [shape: f32[3,1], index: 2, kind: input, shape index: {}]
  %s3 = inlined_call_operand.vmem [shape: f32[2,3,256], index: 3, kind: output, shape index: {}]
  %s4 = sld [smem:[#allocation0]]
  $region53: #{tpu_custom_call.1} parent=0
    _
  %s6 = ssub.s32 1, %s4
  %s7 = scalar_select 0, %s6, %s4
  $region1: #{tpu_custom_call.1} parent=0
    #allocation2 [shape = 'u8[655360]{0}', space=vmem, size = 0xa0000, scoped, tag = 'input window, operand 0']
    #allocation3 [shape = 's32[2]{0}', space=sflag, size = 0x8, scoped, tag = 'scoped memory for tpu_custom_call.1']
    #allocation4 [shape = 'u8[6144]{0}', space=vmem, size = 0x1800, scoped, tag = 'input window, operand 1, single buffered']
    #allocation5 [shape = 's32[1]{0}', space=sflag, size = 0x4, scoped, tag = 'scoped memory for tpu_custom_call.1']
    %8 = vsyncpa [#allocation3], 0
    %s9 = scalar_lea.sflag [#allocation3], 1
    %10 = vsyncpa %s9, 0
    %11 = vsyncpa [#allocation5], 0
    loop: start=0, step=1, limit=4
    $region2: #{tpu_custom_call.1} parent=1 // loop_pre_header
      _
    $region3: #{tpu_custom_call.1} parent=1 // loop_header
      %s13 = sphi 0, %s17
      %p14 = scmp.ge.s32.totalorder %s13, 4
      %s20 = sphi 0, %s32
      %s21 = sphi 0, %s28
      %s22 = sphi 0, %s20
      %s23 = sphi 0, %s21
      %s24 = sphi 0, %s22
      %s25 = sphi 0, %s23
      %s37 = sphi 0, %s39
      %s40 = sphi 0, %s37
      %s41 = sphi 0, %s40
      %s57 = sphi 0, %s41
      %s61 = sphi 0, %s61
      %s63 = sphi 0, %s61
      %s64 = sphi 0, %s63
      %s78 = sphi 0, %s64
      %s82 = sphi 0, %s82
      %s84 = sphi 0, %s82
      %s85 = sphi 0, %s84
      %s99 = sphi 0, %s85
      %s107 = sphi 0, %s109
      %s110 = sphi 0, %s107
      %s111 = sphi 0, %s110
      %s127 = sphi 0, %s111
    $region4: #{tpu_custom_call.1} parent=1 // loop_header_branch
      %16 = sbr.rel (%p14) target = $region8
    $region5: #{tpu_custom_call.1} parent=1 // loop_body
      %s18 = ssub.s32 %s13, 1
      %s19 = ssub.s32 %s13, 2
      %s26 = sadd.s32 1, %s21
      %p27 = scmp.ge.s32.totalorder %s26, 1
      %s28 = scalar_select %p27, 0, %s26
      %s29 = sadd.s32 1, %s20
      %s30 = scalar_select %p27, %s29, %s20
      %p31 = scmp.ge.s32.totalorder %s30, 2
      %s32 = scalar_select %p31, 0, %s30
      %s33 = ssub.s32 %s20, %s32
      %s34 = ssub.s32 %s21, %s28
      %s35 = sor.u32 %s33, %s34
      %p36 = scmp.eq.s32.totalorder %s35, 0
      %s38 = sadd.s32 %s37, 1
      %s39 = scalar_select %p36, %s37, %s38
      %p42 = pneg %p36
      %p43 = scmp.eq.s32.totalorder %s13, 1
      %p44 = por %p42, %p43
      %p45 = scmp.ne.s32.totalorder %s37, %s40
      %p46 = scmp.eq.s32.totalorder %s13, 0
      %p47 = por %p45, %p46
      %p48 = scmp.ne.s32.totalorder %s37, %s40
      %p49 = scmp.eq.s32.totalorder %s18, 1
      %p50 = por %p48, %p49
      %p51 = scmp.ne.s32.totalorder %s40, %s41
      %p52 = scmp.eq.s32.totalorder %s18, 0
      %p53 = por %p51, %p52
      %p54 = scmp.ne.s32.totalorder %s40, %s41
      %p55 = scmp.eq.s32.totalorder %s19, 1
      %p56 = por %p54, %p55
      %p58 = scmp.ne.s32.totalorder %s41, %s57
      %p59 = scmp.eq.s32.totalorder %s19, 0
      %p60 = por %p58, %p59
      %s62 = sadd.s32 %s61, 1
      %p65 = scmp.eq.s32.totalorder %s13, 1
      %p66 = scmp.ne.s32.totalorder %s61, %s63
      %p67 = scmp.eq.s32.totalorder %s13, 0
      %p68 = por %p66, %p67
      %p69 = scmp.ne.s32.totalorder %s61, %s63
      %p70 = scmp.eq.s32.totalorder %s18, 1
      %p71 = por %p69, %p70
      %p72 = scmp.ne.s32.totalorder %s63, %s64
      %p73 = scmp.eq.s32.totalorder %s18, 0
      %p74 = por %p72, %p73
      %p75 = scmp.ne.s32.totalorder %s63, %s64
      %p76 = scmp.eq.s32.totalorder %s19, 1
      %p77 = por %p75, %p76
      %p79 = scmp.ne.s32.totalorder %s64, %s78
      %p80 = scmp.eq.s32.totalorder %s19, 0
      %p81 = por %p79, %p80
      %s83 = sadd.s32 %s82, 1
      %p86 = scmp.eq.s32.totalorder %s13, 1
      %p87 = scmp.ne.s32.totalorder %s82, %s84
      %p88 = scmp.eq.s32.totalorder %s13, 0
      %p89 = por %p87, %p88
      %p90 = scmp.ne.s32.totalorder %s82, %s84
      %p91 = scmp.eq.s32.totalorder %s18, 1
      %p92 = por %p90, %p91
      %p93 = scmp.ne.s32.totalorder %s84, %s85
      %p94 = scmp.eq.s32.totalorder %s18, 0
      %p95 = por %p93, %p94
      %p96 = scmp.ne.s32.totalorder %s84, %s85
      %p97 = scmp.eq.s32.totalorder %s19, 1
      %p98 = por %p96, %p97
      %p100 = scmp.ne.s32.totalorder %s85, %s99
      %p101 = scmp.eq.s32.totalorder %s19, 0
      %p102 = por %p100, %p101
      %s103 = ssub.s32 %s20, %s32
      %s104 = ssub.s32 %s21, %s28
      %s105 = sor.u32 %s103, %s104
      %p106 = scmp.eq.s32.totalorder %s105, 0
      %s108 = sadd.s32 %s107, 1
      %s109 = scalar_select %p106, %s107, %s108
      %p112 = pneg %p106
      %p113 = scmp.eq.s32.totalorder %s13, 1
      %p114 = por %p112, %p113
      %p115 = scmp.ne.s32.totalorder %s107, %s110
      %p116 = scmp.eq.s32.totalorder %s13, 0
      %p117 = por %p115, %p116
      %p118 = scmp.ne.s32.totalorder %s107, %s110
      %p119 = scmp.eq.s32.totalorder %s18, 1
      %p120 = por %p118, %p119
      %p121 = scmp.ne.s32.totalorder %s110, %s111
      %p122 = scmp.eq.s32.totalorder %s18, 0
      %p123 = por %p121, %p122
      %p124 = scmp.ne.s32.totalorder %s110, %s111
      %p125 = scmp.eq.s32.totalorder %s19, 1
      %p126 = por %p124, %p125
      %p128 = scmp.ne.s32.totalorder %s111, %s127
      %p129 = scmp.eq.s32.totalorder %s19, 0
      %p130 = por %p128, %p129
      %p131 = scmp.le.s32.totalorder 1, %s13
      %p132 = scmp.lt.s32.totalorder %s13, 3
      %p133 = pnand %p131, %p132
      %p134 = pneg %p133
      // Predicated region
      $region9: #{tpu_custom_call.1} parent=5 // pred_check
        _
      $region10: #{tpu_custom_call.1} parent=5 // pred_check_branch
        %136 = sbr.rel (%p133) target = $region12
      $region11: #{tpu_custom_call.1} parent=5 // pred_region
        %s137 = ssub.s32 %s13, 1
        // Predicated region
        $region13: #{tpu_custom_call.1} parent=11 // pred_check
          %p138 = pneg %p74
        $region14: #{tpu_custom_call.1} parent=11 // pred_check_branch
          %140 = sbr.rel (%p138) target = $region16
        $region15: #{tpu_custom_call.1} parent=11 // pred_region
          %s142 = ssub.s32 192, 192
          %143 = vsyncadd [#allocation5], %s142
          %s145 = sshll.u32 [#allocation4], 4
          %s146 = int_to_ptr.vmem [resolvable:$true] %s145
          %148 = dma.hbm_to_vmem [thread:$0]  %s1, 192, %s146, [#allocation5]
        $region16: #{tpu_custom_call.1} parent=11 // pred_fallthru
          _
        // Predicated region
        $region17: #{tpu_custom_call.1} parent=11 // pred_check
          %p149 = pneg %p95
        $region18: #{tpu_custom_call.1} parent=11 // pred_check_branch
          %151 = sbr.rel (%p149) target = $region20
        $region19: #{tpu_custom_call.1} parent=11 // pred_region
          _
        $region20: #{tpu_custom_call.1} parent=11 // pred_fallthru
          _
      $region12: #{tpu_custom_call.1} parent=5 // pred_fallthru
        _
      %p152 = scmp.lt.s32.totalorder %s13, 2
      // Predicated region
      $region21: #{tpu_custom_call.1} parent=5 // pred_check
        %p153 = pneg %p152
      $region22: #{tpu_custom_call.1} parent=5 // pred_check_branch
        %155 = sbr.rel (%p153) target = $region24
      $region23: #{tpu_custom_call.1} parent=5 // pred_region
        // Predicated region
        $region25: #{tpu_custom_call.1} parent=23 // pred_check
          %p156 = pneg %p47
        $region26: #{tpu_custom_call.1} parent=23 // pred_check_branch
          %158 = sbr.rel (%p156) target = $region28
        $region27: #{tpu_custom_call.1} parent=23 // pred_region
          %s159 = sand.u32 %s37, 1
          %s160 = scalar_lea.sflag [#allocation3], %s159
          %s161 = sand.u32 %s37, 1
          %s162 = smul.addr %s161, 640
          %s163 = scalar_lea.vmem [#allocation2], %s162
          %s164 = smul.u32 2, %s21
          %s166 = ssub.s32 10240, 10240
          %167 = vsyncadd %s160, %s166
          %s168 = smul.addr %s20, 80
          %s169 = sadd.s32 %s164, %s168
          %s170 = smul.addr %s169, 128
          %s171 = scalar_lea.hbm %s0, %s170
          %s172 = sshll.u32 %s163, 4
          %s173 = int_to_ptr.vmem [resolvable:$true] %s172
          %178 = dma.hbm_to_vmem [thread:$0]  %s171, 10240, %s173, %s160, 256, 256, 16
        $region28: #{tpu_custom_call.1} parent=23 // pred_fallthru
          _
      $region24: #{tpu_custom_call.1} parent=5 // pred_fallthru
        _
      %p179 = scmp.le.s32.totalorder 1, %s13
      %p180 = scmp.lt.s32.totalorder %s13, 3
      %p181 = pnand %p179, %p180
      %p182 = pneg %p181
      // Predicated region
      $region29: #{tpu_custom_call.1} parent=5 // pred_check
        _
      $region30: #{tpu_custom_call.1} parent=5 // pred_check_branch
        %184 = sbr.rel (%p181) target = $region32
      $region31: #{tpu_custom_call.1} parent=5 // pred_region
        %s185 = ssub.s32 %s13, 1
        %s186 = sand.u32 %s40, 1
        %s187 = scalar_lea.sflag [#allocation3], %s186
        %s188 = sand.u32 %s40, 1
        %s189 = smul.addr %s188, 640
        %s190 = scalar_lea.vmem [#allocation2], %s189
        // Predicated region
        $region33: #{tpu_custom_call.1} parent=31 // pred_check
          %p191 = pneg %p53
        $region34: #{tpu_custom_call.1} parent=31 // pred_check_branch
          %193 = sbr.rel (%p191) target = $region36
        $region35: #{tpu_custom_call.1} parent=31 // pred_region
          %194 = dma.done %s187, 10240
        $region36: #{tpu_custom_call.1} parent=31 // pred_fallthru
          _
        // Predicated region
        $region37: #{tpu_custom_call.1} parent=31 // pred_check
          %p195 = pneg %p74
        $region38: #{tpu_custom_call.1} parent=31 // pred_check_branch
          %197 = sbr.rel (%p195) target = $region40
        $region39: #{tpu_custom_call.1} parent=31 // pred_region
          %198 = dma.done [#allocation5], 192
        $region40: #{tpu_custom_call.1} parent=31 // pred_fallthru
          _
        %s199 = sand.u32 %s40, 1
        %s200 = scalar_lea.sflag [#allocation3], %s199
        %s201 = sand.u32 %s40, 1
        %s202 = smul.addr %s201, 640
        %s203 = scalar_lea.vmem [#allocation2], %s202
        %p204 = pneg %p53
        %p205 = pneg %p50
        %p206 = pneg %p74
        %p207 = pneg %p71
        %p208 = pneg %p95
        %p209 = pneg %p92
        %p210 = pneg %p123
        %p211 = pneg %p120
        %s212 = smul.u32 2, %s23
        %p213 = scmp.lt.s32.totalorder %s22, 1
        %s214 = scalar_select %p213, %s22, 1
        %p215 = scmp.lt.s32.totalorder %s212, 1
        %s216 = scalar_select %p215, %s212, 1
        %s217 = smul.addr %s214, 2
        %s218 = sadd.s32 %s216, %s217
        %s219 = smul.addr %s218, 4
        %s220 = scalar_lea.vmem %s3, %s219
        %s221 = smul.u32 2, %s23
        %s222 = smul.u32 2, %s23
        %p223 = scmp.lt.s32.totalorder %s22, 1
        %s224 = scalar_select %p223, %s22, 1
        %p225 = scmp.lt.s32.totalorder %s222, 1
        %s226 = scalar_select %p225, %s222, 1
        %s227 = smul.addr %s224, 2
        %s228 = sadd.s32 %s226, %s227
        %s229 = smul.addr %s228, 4
        %s230 = scalar_lea.vmem %s3, %s229
        %s231 = smul.u32 2, %s23
        %v232 = vld [vmem:[#allocation4] sm:$0x77]
        %v233 = vld [vmem:[#allocation4 + $0x8] sm:$0x7]
        %v234 = vld [vmem:[%s2] sm:$0x7]
        %v235 = vld [vmem:[%s190] sm:$0xff]
        %v236 = vld [vmem:[%s190 + $0x8] sm:$0xff]
        %v237 = vld [vmem:[%s190 + $0x10] sm:$0xff]
        %v238 = vld [vmem:[%s190 + $0x18] sm:$0xff]
        %v239 = vld [vmem:[%s190 + $0x20] sm:$0xff]
        %v240 = vld [vmem:[%s190 + $0x28] sm:$0xff]
        %v241 = vld [vmem:[%s190 + $0x30] sm:$0xff]
        %v242 = vld [vmem:[%s190 + $0x38] sm:$0xff]
        %v243 = vld [vmem:[%s190 + $0x40] sm:$0xff]
        %v244 = vld [vmem:[%s190 + $0x48] sm:$0xff]
        %v245 = vld [vmem:[%s190 + $0x50] sm:$0xff]
        %v246 = vld [vmem:[%s190 + $0x58] sm:$0xff]
        %v247 = vld [vmem:[%s190 + $0x60] sm:$0xff]
        %v248 = vld [vmem:[%s190 + $0x68] sm:$0xff]
        %v249 = vld [vmem:[%s190 + $0x70] sm:$0xff]
        %v250 = vld [vmem:[%s190 + $0x78] sm:$0xff]
        %v251 = vld [vmem:[%s190 + $0x80] sm:$0xff]
        %v252 = vld [vmem:[%s190 + $0x88] sm:$0xff]
        %v253 = vld [vmem:[%s190 + $0x90] sm:$0xff]
        %v254 = vld [vmem:[%s190 + $0x98] sm:$0xff]
        %v255 = vld [vmem:[%s190 + $0xa0] sm:$0xff]
        %v256 = vld [vmem:[%s190 + $0xa8] sm:$0xff]
        %v257 = vld [vmem:[%s190 + $0xb0] sm:$0xff]
        %v258 = vld [vmem:[%s190 + $0xb8] sm:$0xff]
        %v259 = vld [vmem:[%s190 + $0xc0] sm:$0xff]
        %v260 = vld [vmem:[%s190 + $0xc8] sm:$0xff]
        %v261 = vld [vmem:[%s190 + $0xd0] sm:$0xff]
        %v262 = vld [vmem:[%s190 + $0xd8] sm:$0xff]
        %v263 = vld [vmem:[%s190 + $0xe0] sm:$0xff]
        %v264 = vld [vmem:[%s190 + $0xe8] sm:$0xff]
        %v265 = vld [vmem:[%s190 + $0xf0] sm:$0xff]
        %v266 = vld [vmem:[%s190 + $0xf8] sm:$0xff]
        %v267 = vld [vmem:[%s190 + $0x100] sm:$0xff]
        %v268 = vld [vmem:[%s190 + $0x108] sm:$0xff]
        %v269 = vld [vmem:[%s190 + $0x110] sm:$0xff]
        %v270 = vld [vmem:[%s190 + $0x118] sm:$0xff]
        %v271 = vld [vmem:[%s190 + $0x120] sm:$0xff]
        %v272 = vld [vmem:[%s190 + $0x128] sm:$0xff]
        %v273 = vld [vmem:[%s190 + $0x130] sm:$0xff]
        %v274 = vld [vmem:[%s190 + $0x138] sm:$0xff]
        %v275 = vld [vmem:[%s190 + $0x140] sm:$0xff]
        %v276 = vld [vmem:[%s190 + $0x148] sm:$0xff]
        %v277 = vld [vmem:[%s190 + $0x150] sm:$0xff]
        %v278 = vld [vmem:[%s190 + $0x158] sm:$0xff]
        %v279 = vld [vmem:[%s190 + $0x160] sm:$0xff]
        %v280 = vld [vmem:[%s190 + $0x168] sm:$0xff]
        %v281 = vld [vmem:[%s190 + $0x170] sm:$0xff]
        %v282 = vld [vmem:[%s190 + $0x178] sm:$0xff]
        %v283 = vld [vmem:[%s190 + $0x180] sm:$0xff]
        %v284 = vld [vmem:[%s190 + $0x188] sm:$0xff]
        %v285 = vld [vmem:[%s190 + $0x190] sm:$0xff]
        %v286 = vld [vmem:[%s190 + $0x198] sm:$0xff]
        %v287 = vld [vmem:[%s190 + $0x1a0] sm:$0xff]
        %v288 = vld [vmem:[%s190 + $0x1a8] sm:$0xff]
        %v289 = vld [vmem:[%s190 + $0x1b0] sm:$0xff]
        %v290 = vld [vmem:[%s190 + $0x1b8] sm:$0xff]
        %v291 = vld [vmem:[%s190 + $0x1c0] sm:$0xff]
        %v292 = vld [vmem:[%s190 + $0x1c8] sm:$0xff]
        %v293 = vld [vmem:[%s190 + $0x1d0] sm:$0xff]
        %v294 = vld [vmem:[%s190 + $0x1d8] sm:$0xff]
        %v295 = vld [vmem:[%s190 + $0x1e0] sm:$0xff]
        %v296 = vld [vmem:[%s190 + $0x1e8] sm:$0xff]
        %v297 = vld [vmem:[%s190 + $0x1f0] sm:$0xff]
        %v298 = vld [vmem:[%s190 + $0x1f8] sm:$0xff]
        %v299 = vld [vmem:[%s190 + $0x200] sm:$0xff]
        %v300 = vld [vmem:[%s190 + $0x208] sm:$0xff]
        %v301 = vld [vmem:[%s190 + $0x210] sm:$0xff]
        %v302 = vld [vmem:[%s190 + $0x218] sm:$0xff]
        %v303 = vld [vmem:[%s190 + $0x220] sm:$0xff]
        %v304 = vld [vmem:[%s190 + $0x228] sm:$0xff]
        %v305 = vld [vmem:[%s190 + $0x230] sm:$0xff]
        %v306 = vld [vmem:[%s190 + $0x238] sm:$0xff]
        %v307 = vld [vmem:[%s190 + $0x240] sm:$0xff]
        %v308 = vld [vmem:[%s190 + $0x248] sm:$0xff]
        %v309 = vld [vmem:[%s190 + $0x250] sm:$0xff]
        %v310 = vld [vmem:[%s190 + $0x258] sm:$0xff]
        %v311 = vld [vmem:[%s190 + $0x260] sm:$0xff]
        %v312 = vld [vmem:[%s190 + $0x268] sm:$0xff]
        %v313 = vld [vmem:[%s190 + $0x270] sm:$0xff]
        %v314 = vld [vmem:[%s190 + $0x278] sm:$0xff]
        %316 = vset.pattern.permute.xlu0 0
        %317 = vperm.xlu0 %316, %v234
        %v318 = vpop.permute.xlu0 %317
        %v322 = vcombine.high %v232, %v232
        %vm324 = vcmask 523264
        %v325 = vsel %vm324, %v233, 0
        %327 = vmatprep.subr.mxu0 %v266
        %328 = vmatpush1.msra.mxu0 %v265
        %329 = vmatprep.subr.mxu0 %v264
        %330 = vmatpush1.msra.mxu0 %v263
        %331 = vmatprep.subr.mxu0 %v262
        %332 = vmatpush1.msra.mxu0 %v261
        %333 = vmatprep.subr.mxu0 %v260
        %334 = vmatpush1.msra.mxu0 %v259
        %335 = vmatprep.subr.mxu0 %v258
        %336 = vmatpush1.msra.mxu0 %v257
        %337 = vmatprep.subr.mxu0 %v256
        %338 = vmatpush1.msra.mxu0 %v255
        %339 = vmatprep.subr.mxu0 %v254
        %340 = vmatpush1.msra.mxu0 %v253
        %341 = vmatprep.subr.mxu0 %v252
        %342 = vmatpush1.msra.mxu0 %v251
        %343 = vmatprep.subr.mxu0 %v250
        %344 = vmatpush1.msra.mxu0 %v249
        %345 = vmatprep.subr.mxu0 %v248
        %346 = vmatpush1.msra.mxu0 %v247
        %347 = vmatprep.subr.mxu0 %v246
        %348 = vmatpush1.msra.mxu0 %v245
        %349 = vmatprep.subr.mxu0 %v244
        %350 = vmatpush1.msra.mxu0 %v243
        %351 = vmatprep.subr.mxu0 %v242
        %352 = vmatpush1.msra.mxu0 %v241
        %353 = vmatprep.subr.mxu0 %v240
        %354 = vmatpush1.msra.mxu0 %v239
        %355 = vmatprep.subr.mxu0 %v238
        %356 = vmatpush1.msra.mxu0 %v237
        %357 = vmatprep.subr.mxu0 %v236
        %358 = vmatpush1.msra.mxu0 %v235
        %359 = vmatprep.subr.mxu0 %v298
        %360 = vmatpush2.msra.mxu0 %v297
        %361 = vmatprep.subr.mxu0 %v296
        %362 = vmatpush2.msra.mxu0 %v295
        %363 = vmatprep.subr.mxu0 %v294
        %364 = vmatpush2.msra.mxu0 %v293
        %365 = vmatprep.subr.mxu0 %v292
        %366 = vmatpush2.msra.mxu0 %v291
        %367 = vmatprep.subr.mxu0 %v290
        %368 = vmatpush2.msra.mxu0 %v289
        %369 = vmatprep.subr.mxu0 %v288
        %370 = vmatpush2.msra.mxu0 %v287
        %371 = vmatprep.subr.mxu0 %v286
        %372 = vmatpush2.msra.mxu0 %v285
        %373 = vmatprep.subr.mxu0 %v284
        %374 = vmatpush2.msra.mxu0 %v283
        %375 = vmatprep.subr.mxu0 %v282
        %376 = vmatpush2.msra.mxu0 %v281
        %377 = vmatprep.subr.mxu0 %v280
        %378 = vmatpush2.msra.mxu0 %v279
        %379 = vmatprep.subr.mxu0 %v278
        %380 = vmatpush2.msra.mxu0 %v277
        %381 = vmatprep.subr.mxu0 %v276
        %382 = vmatpush2.msra.mxu0 %v275
        %383 = vmatprep.subr.mxu0 %v274
        %384 = vmatpush2.msra.mxu0 %v273
        %385 = vmatprep.subr.mxu0 %v272
        %386 = vmatpush2.msra.mxu0 %v271
        %387 = vmatprep.subr.mxu0 %v270
        %388 = vmatpush2.msra.mxu0 %v269
        %389 = vmatprep.subr.mxu0 %v268
        %390 = vmatpush2.msra.mxu0 %v267
        %391 = vmatprep.mubr.f32.mxu0 %v322
        %392 = vmatmul.mubr.f32.gmra.mxu0 %v232
        %v393 = vpop.f32.mrf.mxu0
        %v394 = vadd.f32 %v318, %v393
        %v395 = vpop.f32.mrf.mxu0
        %v396 = vadd.f32 %v318, %v395
        %397 = vdwg.mxu0
        %398 = vmatprep.subr.mxu0 0.0
        %399 = vmatpush1.msra.mxu0 0.0
        %400 = vmatprep.subr.mxu0 0.0
        %401 = vmatpush1.msra.mxu0 0.0
        %402 = vmatprep.subr.mxu0 0.0
        %403 = vmatpush1.msra.mxu0 0.0
        %404 = vmatprep.subr.mxu0 0.0
        %405 = vmatpush1.msra.mxu0 0.0
        %406 = vmatprep.subr.mxu0 0.0
        %407 = vmatpush1.msra.mxu0 0.0
        %408 = vmatprep.subr.mxu0 0.0
        %409 = vmatpush1.msra.mxu0 0.0
        %410 = vmatprep.subr.mxu0 0.0
        %411 = vmatpush1.msra.mxu0 0.0
        %412 = vmatprep.subr.mxu0 0.0
        %413 = vmatpush1.msra.mxu0 0.0
        %414 = vmatprep.subr.mxu0 %v314
        %415 = vmatpush1.msra.mxu0 %v313
        %416 = vmatprep.subr.mxu0 %v312
        %417 = vmatpush1.msra.mxu0 %v311
        %418 = vmatprep.subr.mxu0 %v310
        %419 = vmatpush1.msra.mxu0 %v309
        %420 = vmatprep.subr.mxu0 %v308
        %421 = vmatpush1.msra.mxu0 %v307
        %422 = vmatprep.subr.mxu0 %v306
        %423 = vmatpush1.msra.mxu0 %v305
        %424 = vmatprep.subr.mxu0 %v304
        %425 = vmatpush1.msra.mxu0 %v303
        %426 = vmatprep.subr.mxu0 %v302
        %427 = vmatpush1.msra.mxu0 %v301
        %428 = vmatprep.subr.mxu0 %v300
        %429 = vmatpush1.msra.mxu0 %v299
        %430 = vmatprep.subr.mxu0 0.0
        %431 = vmatpush2.msra.mxu0 0.0
        %432 = vmatprep.subr.mxu0 0.0
        %433 = vmatpush2.msra.mxu0 0.0
        %434 = vmatprep.subr.mxu0 0.0
        %435 = vmatpush2.msra.mxu0 0.0
        %436 = vmatprep.subr.mxu0 0.0
        %437 = vmatpush2.msra.mxu0 0.0
        %438 = vmatprep.subr.mxu0 0.0
        %439 = vmatpush2.msra.mxu0 0.0
        %440 = vmatprep.subr.mxu0 0.0
        %441 = vmatpush2.msra.mxu0 0.0
        %442 = vmatprep.subr.mxu0 0.0
        %443 = vmatpush2.msra.mxu0 0.0
        %444 = vmatprep.subr.mxu0 0.0
        %445 = vmatpush2.msra.mxu0 0.0
        %446 = vmatprep.subr.mxu0 0.0
        %447 = vmatpush2.msra.mxu0 0.0
        %448 = vmatprep.subr.mxu0 0.0
        %449 = vmatpush2.msra.mxu0 0.0
        %450 = vmatprep.subr.mxu0 0.0
        %451 = vmatpush2.msra.mxu0 0.0
        %452 = vmatprep.subr.mxu0 0.0
        %453 = vmatpush2.msra.mxu0 0.0
        %454 = vmatprep.subr.mxu0 0.0
        %455 = vmatpush2.msra.mxu0 0.0
        %456 = vmatprep.subr.mxu0 0.0
        %457 = vmatpush2.msra.mxu0 0.0
        %458 = vmatprep.subr.mxu0 0.0
        %459 = vmatpush2.msra.mxu0 0.0
        %460 = vmatprep.subr.mxu0 0.0
        %461 = vmatpush2.msra.mxu0 0.0
        %462 = vmatprep.mubr.f32.mxu0 0.0
        %463 = vmatmul.mubr.f32.gmra.mxu0 %v325
        %v464 = vpop.f32.mrf.mxu0
        %v465 = vadd.f32 %v394, %v464
        %v466 = vpop.f32.mrf.mxu0
        %v467 = vadd.f32 %v396, %v466
        %468 = vdwg.mxu0
        %v469 = vsub.f32 0.0, %v465
        %v470 = vsub.f32 0.0, %v467
        %v471 = vmul.f32 %v469, 1.442695
        %v472 = vpow.pop %v471
        %v473 = vmul.f32 %v470, 1.442695
        %v474 = vpow.pop %v473
        %v475 = vadd.f32 %v472, 1.0
        %v476 = vadd.f32 %v474, 1.0
        %v477 = vrcp.pop %v475
        %v478 = vmul.f32 1.0, %v477
        %v479 = vrcp.pop %v476
        %v480 = vmul.f32 1.0, %v479
        %v483 = vcombine.low %v478, %v480
        %485 = vst [vmem:[%s230] sm:$0x77] %v483
        %s486 = smul.u32 2, %s23
        %p487 = scmp.lt.s32.totalorder %s22, 1
        %s488 = scalar_select %p487, %s22, 1
        %p489 = scmp.lt.s32.totalorder %s486, 1
        %s490 = scalar_select %p489, %s486, 1
        %s491 = smul.addr %s488, 2
        %s492 = sadd.s32 %s490, %s491
        %s493 = smul.addr %s492, 4
        %s494 = scalar_lea.vmem %s3, %s493
        // Predicated region
        $region41: #{tpu_custom_call.1} parent=31 // pred_check
          %p495 = pneg %p120
        $region42: #{tpu_custom_call.1} parent=31 // pred_check_branch
          %497 = sbr.rel (%p495) target = $region44
        $region43: #{tpu_custom_call.1} parent=31 // pred_region
          %s498 = smul.u32 2, %s23
        $region44: #{tpu_custom_call.1} parent=31 // pred_fallthru
          _
      $region32: #{tpu_custom_call.1} parent=5 // pred_fallthru
        _
      %p499 = scmp.le.s32.totalorder 2, %s13
      // Predicated region
      $region45: #{tpu_custom_call.1} parent=5 // pred_check
        %p500 = pneg %p499
      $region46: #{tpu_custom_call.1} parent=5 // pred_check_branch
        %502 = sbr.rel (%p500) target = $region48
      $region47: #{tpu_custom_call.1} parent=5 // pred_region
        %s503 = ssub.s32 %s13, 2
        // Predicated region
        $region49: #{tpu_custom_call.1} parent=47 // pred_check
          %p504 = pneg %p126
        $region50: #{tpu_custom_call.1} parent=47 // pred_check_branch
          %506 = sbr.rel (%p504) target = $region52
        $region51: #{tpu_custom_call.1} parent=47 // pred_region
          %s507 = smul.u32 2, %s25
          %p508 = scmp.lt.s32.totalorder %s24, 1
          %s509 = scalar_select %p508, %s24, 1
          %p510 = scmp.lt.s32.totalorder %s507, 1
          %s511 = scalar_select %p510, %s507, 1
          %s512 = smul.addr %s509, 2
          %s513 = sadd.s32 %s511, %s512
          %s514 = smul.addr %s513, 4
          %s515 = scalar_lea.vmem %s3, %s514
        $region52: #{tpu_custom_call.1} parent=47 // pred_fallthru
          _
      $region48: #{tpu_custom_call.1} parent=5 // pred_fallthru
        _
    $region6: #{tpu_custom_call.1} parent=1 // loop_footer
      %s17 = sadd.s32 1, %s13
    $region7: #{tpu_custom_call.1} parent=1 // loop_footer_branch
      %12 = sbr.rel target = $region3
    $region8: #{tpu_custom_call.1} parent=1 // loop_exit
      _
    %516 = vsyncpa [#allocation3], 1
    %s517 = scalar_lea.sflag [#allocation3], 1
    %518 = vsyncpa %s517, 1
    %519 = vsyncpa [#allocation5], 1

</llo_original>
